<compile_context>
chip_gen: v6e
topology: v6e:2x2x1
jax: 0.10.0
libtpu: 0.0.40
codegen_flags: <defaults>
</compile_context>

<pallas_src>
import jax
import jax.numpy as jnp
from jax.experimental import pallas as pl
from jax.experimental.pallas import tpu as pltpu


def _round_up(x, m):
    return ((x + m - 1) // m) * m


def _actor_kernel(x_ref, mask_ref, w1_ref, b1_ref, w2_ref, b2_ref, w3_ref,
                  b3_ref, out_ref):
    """One batch tile: 3 MXU matmuls (bf16 operands, f32 accumulate) + masked softmax."""
    f32 = jnp.float32
    bf16 = jnp.bfloat16

    # Layer 1: Linear + ReLU.  x / weights arrive as bf16 (MXU-native).
    h1 = jnp.dot(x_ref[...], w1_ref[...], preferred_element_type=f32) + b1_ref[...]
    h1 = jnp.maximum(h1, 0.0)
    # Layer 2: Linear + ReLU.
    h2 = jnp.dot(h1.astype(bf16), w2_ref[...], preferred_element_type=f32) + b2_ref[...]
    h2 = jnp.maximum(h2, 0.0)
    # Layer 3: Linear -> logits.
    logits = jnp.dot(h2.astype(bf16), w3_ref[...], preferred_element_type=f32) + b3_ref[...]

    # Additive action mask exactly as the PyTorch module: logits + (mask - 1) * 1e9.
    # Padded action lanes carry mask == 0, so they land at ~-1e9 and contribute
    # exp() == 0 to the softmax normalizer (the wrapper slices them off anyway).
    logits = logits + (mask_ref[...].astype(f32) - 1.0) * 1e9

    # Numerically stable softmax over the action (lane) axis.  Exact division so
    # rows sum to 1 at f32 precision (approx reciprocal caused the prior mismatch).
    m = jnp.max(logits, axis=-1, keepdims=True)
    e = jnp.exp(logits - m)
    denom = jnp.sum(e, axis=-1, keepdims=True)
    out_ref[...] = (e / denom).astype(out_ref.dtype)


def prepare_actor_params(params):
    """Pad lane dims to multiples of 128 and cast weights to bf16 ONCE (init time).

    Weights are stored [in_features, out_features]; biases stay f32 (added after
    the f32 MXU accumulation).  Returns (prepped_arrays, (S, H, A)).
    """
    w1, b1, w2, b2, w3, b3 = params
    S, H = w1.shape
    A = w3.shape[1]
    S_p, H_p, A_p = _round_up(S, 128), _round_up(H, 128), _round_up(A, 128)

    def pad_w(w, rows, cols):
        w = w.astype(jnp.bfloat16)
        return jnp.pad(w, ((0, rows - w.shape[0]), (0, cols - w.shape[1])))

    def pad_b(b, cols):
        b = jnp.asarray(b, jnp.float32).reshape(1, -1)
        return jnp.pad(b, ((0, 0), (0, cols - b.shape[1])))

    prepped = {
        "w1": pad_w(w1, S_p, H_p), "b1": pad_b(b1, H_p),
        "w2": pad_w(w2, H_p, H_p), "b2": pad_b(b2, H_p),
        "w3": pad_w(w3, H_p, A_p), "b3": pad_b(b3, A_p),
    }
    return prepped, (S, H, A)


def actor_net_forward(x, prepped, dims, mask=None, *, batch_tile=512):
    """Pallas forward pass of ActorNet.

    x:    [B, state_dim] float
    mask: [B, action_dim] (1 = valid action, 0 = masked) or None
    Returns [B, action_dim] float32 softmax probabilities.
    """
    S, H, A = dims
    S_p, H_p, A_p = _round_up(S, 128), _round_up(H, 128), _round_up(A, 128)
    B = x.shape[0]

    # Batch tile: always a multiple of 8 (sublane / MXU-M).  Default 512 amortizes
    # the ~0.35us per-grid-step overhead and fills the 256-row MXU on v6e/v7x.
    TB = _round_up(min(int(batch_tile), B), 8)
    # Keep >= 2 grid steps when the batch allows it so the "parallel" axis can be
    # split across the 2 TensorCores on v7x.
    if B > 8 and _round_up(B, TB) // TB < 2:
        TB = _round_up((B + 1) // 2, 8)
    B_p = _round_up(B, TB)
    grid = (B_p // TB,)

    bf16 = jnp.bfloat16
    # x and mask travel as bf16 (dot operands are bf16 anyway; mask is exactly
    # 0/1 so bf16 is lossless).  jnp.pad keeps the wrapper copies fusable.
    x_p = jnp.pad(x.astype(bf16), ((0, B_p - B), (0, S_p - S)))
    mask_core = jnp.ones((B, A), bf16) if mask is None else mask.astype(bf16)
    # Padded action lanes get mask 0 (excluded from softmax); padded batch rows
    # get mask 0 too, which yields a finite (discarded) uniform row — no NaNs.
    mask_p = jnp.pad(mask_core, ((0, B_p - B), (0, A_p - A)))

    def tiled(shape):
        # Blocked along the batch axis; pipelined (double-buffered) across the grid.
        return pl.BlockSpec(shape, lambda i: (i, 0))

    def resident(shape):
        # Constant block index -> block stays VMEM-resident across all grid steps.
        return pl.BlockSpec(shape, lambda i: (0, 0))

    # Scoped-VMEM budget: actual need (double-buffered bf16 weights + activation
    # tiles) plus headroom for f32 intermediates — no blanket 16 MB floor.
    weight_bytes = 2 * (S_p * H_p + H_p * H_p + H_p * A_p) + 4 * (2 * H_p + A_p)
    act_bytes = TB * (2 * S_p + 2 * A_p + 4 * A_p)      # x + mask (bf16), out (f32)
    try:  # cap against the actual chip (64 MiB/core on v7x vs 128 MiB on v5e/v6e)
        vmem_cap = pltpu.get_tpu_info().vmem_capacity_bytes
    except Exception:
        vmem_cap = 64 << 20
    vmem_limit = int(min(2 * (weight_bytes + act_bytes) + (8 << 20),
                         (vmem_cap * 3) // 4))
    # TODO(synk): for very large hidden_dim on v7x, K-tile w2 over a second
    # "arbitrary" grid axis with an f32 VMEM accumulator instead of full residency.

    out_p = pl.pallas_call(
        _actor_kernel,
        out_shape=jax.ShapeDtypeStruct((B_p, A_p), jnp.float32),
        grid=grid,
        in_specs=[
            tiled((TB, S_p)),          # x        (bf16, pipelined)
            tiled((TB, A_p)),          # mask     (bf16, pipelined)
            resident((S_p, H_p)),      # w1       (bf16, resident)
            resident((1, H_p)),        # b1       (f32,  resident)
            resident((H_p, H_p)),      # w2       (bf16, resident)
            resident((1, H_p)),        # b2       (f32,  resident)
            resident((H_p, A_p)),      # w3       (bf16, resident)
            resident((1, A_p)),        # b3       (f32,  resident)
        ],
        out_specs=tiled((TB, A_p)),
        compiler_params=pltpu.CompilerParams(
            dimension_semantics=("parallel",),
            vmem_limit_bytes=vmem_limit,
        ),
    )(x_p, mask_p, prepped["w1"], prepped["b1"], prepped["w2"], prepped["b2"],
      prepped["w3"], prepped["b3"])

    return out_p[:B, :A]


def init_actor_params(key, state_dim, hidden_dim, action_dim):
    """PyTorch-style uniform(+/- 1/sqrt(fan_in)) init; weights stored [in, out]."""
    def linear(key, fan_in, fan_out):
        kw, kb = jax.random.split(key)
        bound = 1.0 / jnp.sqrt(jnp.float32(fan_in))
        w = jax.random.uniform(kw, (fan_in, fan_out), jnp.float32, -bound, bound)
        b = jax.random.uniform(kb, (1, fan_out), jnp.float32, -bound, bound)
        return w, b

    k1, k2, k3 = jax.random.split(key, 3)
    w1, b1 = linear(k1, state_dim, hidden_dim)
    w2, b2 = linear(k2, hidden_dim, hidden_dim)
    w3, b3 = linear(k3, hidden_dim, action_dim)
    return (w1, b1, w2, b2, w3, b3)


def actor_net_reference(x, params, mask=None):
    """Pure-JAX (f32) reference for correctness checking."""
    w1, b1, w2, b2, w3, b3 = params
    h1 = jnp.maximum(x @ w1 + b1, 0.0)
    h2 = jnp.maximum(h1 @ w2 + b2, 0.0)
    logits = h2 @ w3 + b3
    if mask is not None:
        logits = logits + (mask - 1.0) * 1e9
    return jax.nn.softmax(logits, axis=-1)


if __name__ == "__main__":
    # Small shapes consistent with ActorNet(state_dim, action_dim=len(M), hidden_dim).
    batch, state_dim, hidden_dim, action_dim = 2, 64, 32, 8

    key = jax.random.PRNGKey(0)
    kx, kp, km = jax.random.split(key, 3)

    x = jax.random.normal(kx, (batch, state_dim), dtype=jnp.float32)
    params = init_actor_params(kp, state_dim, hidden_dim, action_dim)
    prepped, dims = prepare_actor_params(params)   # pad + bf16-cast weights once

    # Deterministic 0/1 action mask; keep at least the first action valid.
    mask = (jax.random.uniform(km, (batch, action_dim)) > 0.3).astype(jnp.float32)
    mask = mask.at[:, 0].set(1.0)

    out = actor_net_forward(x, prepped, dims, mask=mask)
    out = jax.block_until_ready(out)

    ref = actor_net_reference(x, params, mask=mask)
    assert out.shape == (batch, action_dim)
    # bf16 MXU operands (f32 accumulate) => compare at bf16-level tolerances.
    assert bool(jnp.allclose(out, ref, atol=2e-2, rtol=2e-2)), "mismatch vs reference"
    # Exact softmax divide => rows normalize to 1 at f32 precision.
    assert bool(jnp.allclose(jnp.sum(out, axis=-1), 1.0, atol=1e-3)), "softmax not normalized"

    print("KERNEL_OK")
</pallas_src>

<mosaic_0001>
module attributes {stable_mosaic.version = 11 : i64} {
  func.func @_actor_kernel(%arg0: i32, %arg1: memref<8x128xbf16, #tpu.memory_space<vmem>>, %arg2: memref<8x128xbf16, #tpu.memory_space<vmem>>, %arg3: memref<128x128xbf16, #tpu.memory_space<vmem>>, %arg4: memref<1x128xf32, #tpu.memory_space<vmem>>, %arg5: memref<128x128xbf16, #tpu.memory_space<vmem>>, %arg6: memref<1x128xf32, #tpu.memory_space<vmem>>, %arg7: memref<128x128xbf16, #tpu.memory_space<vmem>>, %arg8: memref<1x128xf32, #tpu.memory_space<vmem>>, %arg9: memref<8x128xf32, #tpu.memory_space<vmem>>) attributes {dimension_semantics = [#tpu.dimension_semantics<parallel>], iteration_bounds = array<i64: 1>, scalar_prefetch = 0 : i64, scratch_operands = 0 : i64, tpu.core_type = #tpu.core_type<tc>, window_params = [{transform_indices = @transform_0, window_bounds = array<i64: 8, 128>}, {transform_indices = @transform_1, window_bounds = array<i64: 8, 128>}, {pipeline_mode = #tpu.pipeline_mode<synchronous>, transform_indices = @transform_2, window_bounds = array<i64: 128, 128>}, {pipeline_mode = #tpu.pipeline_mode<synchronous>, transform_indices = @transform_3, window_bounds = array<i64: 1, 128>}, {pipeline_mode = #tpu.pipeline_mode<synchronous>, transform_indices = @transform_4, window_bounds = array<i64: 128, 128>}, {pipeline_mode = #tpu.pipeline_mode<synchronous>, transform_indices = @transform_5, window_bounds = array<i64: 1, 128>}, {pipeline_mode = #tpu.pipeline_mode<synchronous>, transform_indices = @transform_6, window_bounds = array<i64: 128, 128>}, {pipeline_mode = #tpu.pipeline_mode<synchronous>, transform_indices = @transform_7, window_bounds = array<i64: 1, 128>}, {transform_indices = @transform_8, window_bounds = array<i64: 8, 128>}]} {
    %c0 = arith.constant 0 : index
    %c0_0 = arith.constant 0 : index
    %0 = vector.load %arg1[%c0, %c0_0] : memref<8x128xbf16, #tpu.memory_space<vmem>>, vector<8x128xbf16>
    %c0_1 = arith.constant 0 : index
    %c0_2 = arith.constant 0 : index
    %1 = vector.load %arg3[%c0_1, %c0_2] : memref<128x128xbf16, #tpu.memory_space<vmem>>, vector<128x128xbf16>
    %cst = arith.constant dense<0.000000e+00> : vector<8x128xf32>
    %2 = tpu.matmul %0, %1, %cst {dimension_numbers = #tpu.dot_dimension_numbers<[1], [0], [0], [1], [0, 0, 1, 1], [], []>} : vector<8x128xbf16>, vector<128x128xbf16>, vector<8x128xf32> -> vector<8x128xf32>
    %c0_3 = arith.constant 0 : index
    %c0_4 = arith.constant 0 : index
    %3 = vector.load %arg4[%c0_3, %c0_4] : memref<1x128xf32, #tpu.memory_space<vmem>>, vector<1x128xf32>
    %4 = vector.broadcast %3 : vector<1x128xf32> to vector<8x128xf32>
    %5 = arith.addf %2, %4 : vector<8x128xf32>
    %cst_5 = arith.constant 0.000000e+00 : f32
    %6 = vector.broadcast %cst_5 : f32 to vector<8x128xf32>
    %7 = arith.maximumf %5, %6 : vector<8x128xf32>
    %8 = arith.truncf %7 : vector<8x128xf32> to vector<8x128xbf16>
    %c0_6 = arith.constant 0 : index
    %c0_7 = arith.constant 0 : index
    %9 = vector.load %arg5[%c0_6, %c0_7] : memref<128x128xbf16, #tpu.memory_space<vmem>>, vector<128x128xbf16>
    %cst_8 = arith.constant dense<0.000000e+00> : vector<8x128xf32>
    %10 = tpu.matmul %8, %9, %cst_8 {dimension_numbers = #tpu.dot_dimension_numbers<[1], [0], [0], [1], [0, 0, 1, 1], [], []>} : vector<8x128xbf16>, vector<128x128xbf16>, vector<8x128xf32> -> vector<8x128xf32>
    %c0_9 = arith.constant 0 : index
    %c0_10 = arith.constant 0 : index
    %11 = vector.load %arg6[%c0_9, %c0_10] : memref<1x128xf32, #tpu.memory_space<vmem>>, vector<1x128xf32>
    %12 = vector.broadcast %11 : vector<1x128xf32> to vector<8x128xf32>
    %13 = arith.addf %10, %12 : vector<8x128xf32>
    %cst_11 = arith.constant 0.000000e+00 : f32
    %14 = vector.broadcast %cst_11 : f32 to vector<8x128xf32>
    %15 = arith.maximumf %13, %14 : vector<8x128xf32>
    %16 = arith.truncf %15 : vector<8x128xf32> to vector<8x128xbf16>
    %c0_12 = arith.constant 0 : index
    %c0_13 = arith.constant 0 : index
    %17 = vector.load %arg7[%c0_12, %c0_13] : memref<128x128xbf16, #tpu.memory_space<vmem>>, vector<128x128xbf16>
    %cst_14 = arith.constant dense<0.000000e+00> : vector<8x128xf32>
    %18 = tpu.matmul %16, %17, %cst_14 {dimension_numbers = #tpu.dot_dimension_numbers<[1], [0], [0], [1], [0, 0, 1, 1], [], []>} : vector<8x128xbf16>, vector<128x128xbf16>, vector<8x128xf32> -> vector<8x128xf32>
    %c0_15 = arith.constant 0 : index
    %c0_16 = arith.constant 0 : index
    %19 = vector.load %arg8[%c0_15, %c0_16] : memref<1x128xf32, #tpu.memory_space<vmem>>, vector<1x128xf32>
    %20 = vector.broadcast %19 : vector<1x128xf32> to vector<8x128xf32>
    %21 = arith.addf %18, %20 : vector<8x128xf32>
    %c0_17 = arith.constant 0 : index
    %c0_18 = arith.constant 0 : index
    %22 = vector.load %arg2[%c0_17, %c0_18] : memref<8x128xbf16, #tpu.memory_space<vmem>>, vector<8x128xbf16>
    %23 = arith.extf %22 : vector<8x128xbf16> to vector<8x128xf32>
    %cst_19 = arith.constant 1.000000e+00 : f32
    %24 = vector.broadcast %cst_19 : f32 to vector<8x128xf32>
    %25 = arith.subf %23, %24 : vector<8x128xf32>
    %cst_20 = arith.constant 1.000000e+09 : f32
    %26 = vector.broadcast %cst_20 : f32 to vector<8x128xf32>
    %27 = arith.mulf %25, %26 : vector<8x128xf32>
    %28 = arith.addf %21, %27 : vector<8x128xf32>
    %cst_21 = arith.constant dense<0xFF800000> : vector<8xf32>
    %29 = vector.multi_reduction <maximumf>, %28, %cst_21 [1] : vector<8x128xf32> to vector<8xf32>
    %30 = vector.shape_cast %29 : vector<8xf32> to vector<8x1xf32>
    %31 = vector.broadcast %30 : vector<8x1xf32> to vector<8x128xf32>
    %32 = arith.subf %28, %31 : vector<8x128xf32>
    %33 = math.exp %32 : vector<8x128xf32>
    %cst_22 = arith.constant dense<0.000000e+00> : vector<8xf32>
    %34 = vector.multi_reduction <add>, %33, %cst_22 [1] : vector<8x128xf32> to vector<8xf32>
    %35 = vector.shape_cast %34 : vector<8xf32> to vector<8x1xf32>
    %36 = vector.broadcast %35 : vector<8x1xf32> to vector<8x128xf32>
    %37 = arith.divf %33, %36 : vector<8x128xf32>
    %c0_23 = arith.constant 0 : index
    %c0_24 = arith.constant 0 : index
    %38 = vector.load %arg9[%c0_23, %c0_24] : memref<8x128xf32, #tpu.memory_space<vmem>>, vector<8x128xf32>
    tpu.vector_store %arg9[%c0_23, %c0_24], %37 {strides = array<i32>} : memref<8x128xf32, #tpu.memory_space<vmem>>, vector<8x128xf32>,
    return
  }
  func.func @transform_0(%arg0: i32) -> (i32, i32) {
    %c0_i32 = arith.constant 0 : i32
    %c0_i32_0 = arith.constant 0 : i32
    return %arg0, %c0_i32 : i32, i32
  }
  func.func @transform_1(%arg0: i32) -> (i32, i32) {
    %c0_i32 = arith.constant 0 : i32
    %c0_i32_0 = arith.constant 0 : i32
    return %arg0, %c0_i32 : i32, i32
  }
  func.func @transform_2(%arg0: i32) -> (i32, i32) {
    %c0_i32 = arith.constant 0 : i32
    %c0_i32_0 = arith.constant 0 : i32
    %c0_i32_1 = arith.constant 0 : i32
    return %c0_i32, %c0_i32_0 : i32, i32
  }
  func.func @transform_3(%arg0: i32) -> (i32, i32) {
    %c0_i32 = arith.constant 0 : i32
    %c0_i32_0 = arith.constant 0 : i32
    %c0_i32_1 = arith.constant 0 : i32
    return %c0_i32, %c0_i32_0 : i32, i32
  }
  func.func @transform_4(%arg0: i32) -> (i32, i32) {
    %c0_i32 = arith.constant 0 : i32
    %c0_i32_0 = arith.constant 0 : i32
    %c0_i32_1 = arith.constant 0 : i32
    return %c0_i32, %c0_i32_0 : i32, i32
  }
  func.func @transform_5(%arg0: i32) -> (i32, i32) {
    %c0_i32 = arith.constant 0 : i32
    %c0_i32_0 = arith.constant 0 : i32
    %c0_i32_1 = arith.constant 0 : i32
    return %c0_i32, %c0_i32_0 : i32, i32
  }
  func.func @transform_6(%arg0: i32) -> (i32, i32) {
    %c0_i32 = arith.constant 0 : i32
    %c0_i32_0 = arith.constant 0 : i32
    %c0_i32_1 = arith.constant 0 : i32
    return %c0_i32, %c0_i32_0 : i32, i32
  }
  func.func @transform_7(%arg0: i32) -> (i32, i32) {
    %c0_i32 = arith.constant 0 : i32
    %c0_i32_0 = arith.constant 0 : i32
    %c0_i32_1 = arith.constant 0 : i32
    return %c0_i32, %c0_i32_0 : i32, i32
  }
  func.func @transform_8(%arg0: i32) -> (i32, i32) {
    %c0_i32 = arith.constant 0 : i32
    %c0_i32_0 = arith.constant 0 : i32
    return %arg0, %c0_i32 : i32, i32
  }
}

</mosaic_0001>

<llo_original>
// kernel: tpu_custom_call.1
$region0: #{tpu_custom_call.1}
  #allocation0 [shape = 'u32[]', space=smem, size = 0x4, offset = 0x4, fixed_abs, tag = 'smem constant byte address 0x4 - core index']
  #allocation1 [shape = 'u32[144,128]{1,0:T(1,128)}', space=vmem, size = 0x12000, scoped, tag = 'internal scratch']
  %s0 = inlined_call_operand.hbm [shape: bf16[8,128], index: 0, kind: input, shape index: {}]
  %s1 = inlined_call_operand.hbm [shape: bf16[8,128], index: 1, kind: input, shape index: {}]
  %s2 = inlined_call_operand.hbm [shape: bf16[128,128], index: 2, kind: input, shape index: {}]
  %s3 = inlined_call_operand.vmem [shape: f32[1,128], index: 3, kind: input, shape index: {}]
  %s4 = inlined_call_operand.hbm [shape: bf16[128,128], index: 4, kind: input, shape index: {}]
  %s5 = inlined_call_operand.vmem [shape: f32[1,128], index: 5, kind: input, shape index: {}]
  %s6 = inlined_call_operand.hbm [shape: bf16[128,128], index: 6, kind: input, shape index: {}]
  %s7 = inlined_call_operand.vmem [shape: f32[1,128], index: 7, kind: input, shape index: {}]
  %s8 = inlined_call_operand.hbm [shape: f32[8,128], index: 8, kind: output, shape index: {}]
  %s9 = sld [smem:[#allocation0]]
  $region62: #{tpu_custom_call.1} parent=0
    _
  %s11 = ssub.s32 1, %s9
  %s12 = scalar_select 0, %s11, %s9
  $region1: #{tpu_custom_call.1} parent=0
    #allocation2 [shape = 'u8[2048]{0}', space=vmem, size = 0x800, scoped, tag = 'input window, operand 0, single buffered']
    #allocation3 [shape = 's32[1]{0}', space=sflag, size = 0x4, scoped, tag = 'scoped memory for tpu_custom_call.1']
    #allocation4 [shape = 's32[1]{0}', space=sflag, size = 0x4, scoped, tag = 'scoped memory for tpu_custom_call.1']
    #allocation5 [shape = 'u8[2048]{0}', space=vmem, size = 0x800, scoped, tag = 'input window, operand 1, single buffered']
    #allocation6 [shape = 's32[1]{0}', space=sflag, size = 0x4, scoped, tag = 'scoped memory for tpu_custom_call.1']
    #allocation7 [shape = 'u8[32768]{0}', space=vmem, size = 0x8000, scoped, tag = 'input window, operand 2, single buffered']
    #allocation8 [shape = 'u8[32768]{0}', space=vmem, size = 0x8000, scoped, tag = 'input window, operand 4, single buffered']
    #allocation9 [shape = 's32[1]{0}', space=sflag, size = 0x4, scoped, tag = 'scoped memory for tpu_custom_call.1']
    #allocation10 [shape = 'u8[32768]{0}', space=vmem, size = 0x8000, scoped, tag = 'input window, operand 6, single buffered']
    #allocation11 [shape = 'u8[4096]{0}', space=vmem, size = 0x1000, scoped, tag = 'output window, operand 0, single buffered']
    %13 = vsyncpa [#allocation3], 0
    %14 = vsyncpa [#allocation6], 0
    %15 = vsyncpa [#allocation9], 0
    %16 = vsyncpa [#allocation4], 0
    // Predicated region
    $region2: #{tpu_custom_call.1} parent=1 // pred_check
      _
    $region3: #{tpu_custom_call.1} parent=1 // pred_check_branch
      %18 = sbr.rel (0) target = $region5
    $region4: #{tpu_custom_call.1} parent=1 // pred_region
      %s20 = ssub.s32 64, 64
      %21 = vsyncadd [#allocation3], %s20
      %s23 = sshll.u32 [#allocation2], 4
      %s24 = int_to_ptr.vmem [resolvable:$true] %s23
      %26 = dma.hbm_to_vmem [thread:$0]  %s0, 64, %s24, [#allocation3]
    $region5: #{tpu_custom_call.1} parent=1 // pred_fallthru
      _
    // Predicated region
    $region6: #{tpu_custom_call.1} parent=1 // pred_check
      _
    $region7: #{tpu_custom_call.1} parent=1 // pred_check_branch
      %28 = sbr.rel (0) target = $region9
    $region8: #{tpu_custom_call.1} parent=1 // pred_region
      %s30 = ssub.s32 64, 64
      %31 = vsyncadd [#allocation6], %s30
      %s33 = sshll.u32 [#allocation5], 4
      %s34 = int_to_ptr.vmem [resolvable:$true] %s33
      %36 = dma.hbm_to_vmem [thread:$0]  %s1, 64, %s34, [#allocation6]
    $region9: #{tpu_custom_call.1} parent=1 // pred_fallthru
      _
    // Predicated region
    $region10: #{tpu_custom_call.1} parent=1 // pred_check
      _
    $region11: #{tpu_custom_call.1} parent=1 // pred_check_branch
      %38 = sbr.rel (0) target = $region13
    $region12: #{tpu_custom_call.1} parent=1 // pred_region
      %s40 = ssub.s32 1024, 1024
      %41 = vsyncadd [#allocation6], %s40
      %s42 = sshll.u32 [#allocation7], 4
      %s43 = int_to_ptr.vmem [resolvable:$true] %s42
      %48 = dma.hbm_to_vmem [thread:$0]  %s2, 1024, %s43, [#allocation6], 64, 64, 4
    $region13: #{tpu_custom_call.1} parent=1 // pred_fallthru
      _
    // Predicated region
    $region14: #{tpu_custom_call.1} parent=1 // pred_check
      _
    $region15: #{tpu_custom_call.1} parent=1 // pred_check_branch
      %50 = sbr.rel (0) target = $region17
    $region16: #{tpu_custom_call.1} parent=1 // pred_region
      _
    $region17: #{tpu_custom_call.1} parent=1 // pred_fallthru
      _
    // Predicated region
    $region18: #{tpu_custom_call.1} parent=1 // pred_check
      _
    $region19: #{tpu_custom_call.1} parent=1 // pred_check_branch
      %52 = sbr.rel (0) target = $region21
    $region20: #{tpu_custom_call.1} parent=1 // pred_region
      %s54 = ssub.s32 1024, 1024
      %55 = vsyncadd [#allocation9], %s54
      %s56 = sshll.u32 [#allocation8], 4
      %s57 = int_to_ptr.vmem [resolvable:$true] %s56
      %62 = dma.hbm_to_vmem [thread:$0]  %s4, 1024, %s57, [#allocation9], 64, 64, 4
    $region21: #{tpu_custom_call.1} parent=1 // pred_fallthru
      _
    // Predicated region
    $region22: #{tpu_custom_call.1} parent=1 // pred_check
      _
    $region23: #{tpu_custom_call.1} parent=1 // pred_check_branch
      %64 = sbr.rel (0) target = $region25
    $region24: #{tpu_custom_call.1} parent=1 // pred_region
      _
    $region25: #{tpu_custom_call.1} parent=1 // pred_fallthru
      _
    // Predicated region
    $region26: #{tpu_custom_call.1} parent=1 // pred_check
      _
    $region27: #{tpu_custom_call.1} parent=1 // pred_check_branch
      %66 = sbr.rel (0) target = $region29
    $region28: #{tpu_custom_call.1} parent=1 // pred_region
      %s68 = ssub.s32 1024, 1024
      %69 = vsyncadd [#allocation9], %s68
      %s70 = sshll.u32 [#allocation10], 4
      %s71 = int_to_ptr.vmem [resolvable:$true] %s70
      %76 = dma.hbm_to_vmem [thread:$0]  %s6, 1024, %s71, [#allocation9], 64, 64, 4
    $region29: #{tpu_custom_call.1} parent=1 // pred_fallthru
      _
    // Predicated region
    $region30: #{tpu_custom_call.1} parent=1 // pred_check
      _
    $region31: #{tpu_custom_call.1} parent=1 // pred_check_branch
      %78 = sbr.rel (0) target = $region33
    $region32: #{tpu_custom_call.1} parent=1 // pred_region
      _
    $region33: #{tpu_custom_call.1} parent=1 // pred_fallthru
      _
    // Predicated region
    $region34: #{tpu_custom_call.1} parent=1 // pred_check
      _
    $region35: #{tpu_custom_call.1} parent=1 // pred_check_branch
      %80 = sbr.rel (0) target = $region37
    $region36: #{tpu_custom_call.1} parent=1 // pred_region
      %81 = dma.done [#allocation3], 64
    $region37: #{tpu_custom_call.1} parent=1 // pred_fallthru
      _
    // Predicated region
    $region38: #{tpu_custom_call.1} parent=1 // pred_check
      _
    $region39: #{tpu_custom_call.1} parent=1 // pred_check_branch
      %83 = sbr.rel (0) target = $region41
    $region40: #{tpu_custom_call.1} parent=1 // pred_region
      %84 = dma.done [#allocation6], 64
    $region41: #{tpu_custom_call.1} parent=1 // pred_fallthru
      _
    // Predicated region
    $region42: #{tpu_custom_call.1} parent=1 // pred_check
      _
    $region43: #{tpu_custom_call.1} parent=1 // pred_check_branch
      %86 = sbr.rel (0) target = $region45
    $region44: #{tpu_custom_call.1} parent=1 // pred_region
      %87 = dma.done [#allocation6], 1024
    $region45: #{tpu_custom_call.1} parent=1 // pred_fallthru
      _
    // Predicated region
    $region46: #{tpu_custom_call.1} parent=1 // pred_check
      _
    $region47: #{tpu_custom_call.1} parent=1 // pred_check_branch
      %89 = sbr.rel (0) target = $region49
    $region48: #{tpu_custom_call.1} parent=1 // pred_region
      %90 = dma.done [#allocation9], 1024
    $region49: #{tpu_custom_call.1} parent=1 // pred_fallthru
      _
    // Predicated region
    $region50: #{tpu_custom_call.1} parent=1 // pred_check
      _
    $region51: #{tpu_custom_call.1} parent=1 // pred_check_branch
      %92 = sbr.rel (0) target = $region53
    $region52: #{tpu_custom_call.1} parent=1 // pred_region
      %93 = dma.done [#allocation9], 1024
    $region53: #{tpu_custom_call.1} parent=1 // pred_fallthru
      _
    %v95 = vld [vmem:[#allocation2] sm:$0xf]
    %v96 = vld [vmem:[#allocation7] sm:$0xf]
    %v97 = vld [vmem:[#allocation7 + $0x4] sm:$0xf]
    %v98 = vld [vmem:[#allocation7 + $0x8] sm:$0xf]
    %v99 = vld [vmem:[#allocation7 + $0xc] sm:$0xf]
    %v100 = vld [vmem:[#allocation7 + $0x10] sm:$0xf]
    %v101 = vld [vmem:[#allocation7 + $0x14] sm:$0xf]
    %v102 = vld [vmem:[#allocation7 + $0x18] sm:$0xf]
    %v103 = vld [vmem:[#allocation7 + $0x1c] sm:$0xf]
    %v104 = vld [vmem:[#allocation7 + $0x20] sm:$0xf]
    %v105 = vld [vmem:[#allocation7 + $0x24] sm:$0xf]
    %v106 = vld [vmem:[#allocation7 + $0x28] sm:$0xf]
    %v107 = vld [vmem:[#allocation7 + $0x2c] sm:$0xf]
    %v108 = vld [vmem:[#allocation7 + $0x30] sm:$0xf]
    %v109 = vld [vmem:[#allocation7 + $0x34] sm:$0xf]
    %v110 = vld [vmem:[#allocation7 + $0x38] sm:$0xf]
    %v111 = vld [vmem:[#allocation7 + $0x3c] sm:$0xf]
    %v112 = vld [vmem:[%s3] sm:$0x1]
    %v114 = vlaneseq
    %v115 = vshrl.u32 %v114, 7
    %v116 = vsub.s32 0, %v115
    %v117 = vrot.slane %v112, %v116
    %v135 = vunpack.c.l.b16 %v96
    %v136 = vunpack.c.l.b16 %v97
    %v137 = vunpack.c.l.b16 %v98
    %v138 = vunpack.c.l.b16 %v99
    %v139 = vunpack.c.l.b16 %v100
    %v140 = vunpack.c.l.b16 %v101
    %v141 = vunpack.c.l.b16 %v102
    %v142 = vunpack.c.l.b16 %v103
    %v143 = vunpack.c.l.b16 %v104
    %v144 = vunpack.c.l.b16 %v105
    %v145 = vunpack.c.l.b16 %v106
    %v146 = vunpack.c.l.b16 %v107
    %v147 = vunpack.c.l.b16 %v108
    %v148 = vunpack.c.l.b16 %v109
    %v149 = vunpack.c.l.b16 %v110
    %v150 = vunpack.c.l.b16 %v111
    %v151 = vpack.c.b16 %v136, %v135
    %v152 = vpack.c.b16 %v138, %v137
    %v153 = vpack.c.b16 %v140, %v139
    %v154 = vpack.c.b16 %v142, %v141
    %v155 = vpack.c.b16 %v144, %v143
    %v156 = vpack.c.b16 %v146, %v145
    %v157 = vpack.c.b16 %v148, %v147
    %v158 = vpack.c.b16 %v150, %v149
    %167 = vmatprep.subr.bf16.mxu0 0
    %168 = vmatpush1.bf16.msra.mxu0 %v158
    %169 = vmatprep.subr.bf16.mxu0 0
    %170 = vmatpush1.bf16.msra.mxu0 %v157
    %171 = vmatprep.subr.bf16.mxu0 0
    %172 = vmatpush1.bf16.msra.mxu0 %v156
    %173 = vmatprep.subr.bf16.mxu0 0
    %174 = vmatpush1.bf16.msra.mxu0 %v155
    %175 = vmatprep.subr.bf16.mxu0 0
    %176 = vmatpush1.bf16.msra.mxu0 %v154
    %177 = vmatprep.subr.bf16.mxu0 0
    %178 = vmatpush1.bf16.msra.mxu0 %v153
    %179 = vmatprep.subr.bf16.mxu0 0
    %180 = vmatpush1.bf16.msra.mxu0 %v152
    %181 = vmatprep.subr.bf16.mxu0 0
    %182 = vmatpush1.bf16.msra.mxu0 %v151
    %183 = vmatprep.subr.bf16.mxu0 0
    %184 = vmatpush2.bf16.msra.mxu0 0
    %185 = vmatprep.subr.bf16.mxu0 0
    %186 = vmatpush2.bf16.msra.mxu0 0
    %187 = vmatprep.subr.bf16.mxu0 0
    %188 = vmatpush2.bf16.msra.mxu0 0
    %189 = vmatprep.subr.bf16.mxu0 0
    %190 = vmatpush2.bf16.msra.mxu0 0
    %191 = vmatprep.subr.bf16.mxu0 0
    %192 = vmatpush2.bf16.msra.mxu0 0
    %193 = vmatprep.subr.bf16.mxu0 0
    %194 = vmatpush2.bf16.msra.mxu0 0
    %195 = vmatprep.subr.bf16.mxu0 0
    %196 = vmatpush2.bf16.msra.mxu0 0
    %197 = vmatprep.subr.bf16.mxu0 0
    %198 = vmatpush2.bf16.msra.mxu0 0
    %199 = vmatprep.mubr.bf16.mxu0 0
    %200 = vmatmul.mubr.bf16.gmra.mxu0 %v95
    %v201 = vpop.f32.mrf.mxu0
    %v202 = vadd.f32 %v117, %v201
    %v203 = vpop.f32.mrf.mxu0
    %v204 = vpop.f32.mrf.mxu0
    %v205 = vpop.f32.mrf.mxu0
    %206 = vdwg.mxu0
    %v207 = vmax.f32 %v202, 0.0
    %v208 = vpack.c.bf16 %v207, %v207
    %v209 = vld [vmem:[#allocation8] sm:$0xf]
    %v210 = vld [vmem:[#allocation8 + $0x4] sm:$0xf]
    %v211 = vld [vmem:[#allocation8 + $0x8] sm:$0xf]
    %v212 = vld [vmem:[#allocation8 + $0xc] sm:$0xf]
    %v213 = vld [vmem:[#allocation8 + $0x10] sm:$0xf]
    %v214 = vld [vmem:[#allocation8 + $0x14] sm:$0xf]
    %v215 = vld [vmem:[#allocation8 + $0x18] sm:$0xf]
    %v216 = vld [vmem:[#allocation8 + $0x1c] sm:$0xf]
    %v217 = vld [vmem:[#allocation8 + $0x20] sm:$0xf]
    %v218 = vld [vmem:[#allocation8 + $0x24] sm:$0xf]
    %v219 = vld [vmem:[#allocation8 + $0x28] sm:$0xf]
    %v220 = vld [vmem:[#allocation8 + $0x2c] sm:$0xf]
    %v221 = vld [vmem:[#allocation8 + $0x30] sm:$0xf]
    %v222 = vld [vmem:[#allocation8 + $0x34] sm:$0xf]
    %v223 = vld [vmem:[#allocation8 + $0x38] sm:$0xf]
    %v224 = vld [vmem:[#allocation8 + $0x3c] sm:$0xf]
    %v225 = vld [vmem:[%s5] sm:$0x1]
    %v227 = vlaneseq
    %v228 = vshrl.u32 %v227, 7
    %v229 = vsub.s32 0, %v228
    %v230 = vrot.slane %v225, %v229
    %v248 = vunpack.c.l.b16 %v209
    %v249 = vunpack.c.l.b16 %v210
    %v250 = vunpack.c.l.b16 %v211
    %v251 = vunpack.c.l.b16 %v212
    %v252 = vunpack.c.l.b16 %v213
    %v253 = vunpack.c.l.b16 %v214
    %v254 = vunpack.c.l.b16 %v215
    %v255 = vunpack.c.l.b16 %v216
    %v256 = vunpack.c.l.b16 %v217
    %v257 = vunpack.c.l.b16 %v218
    %v258 = vunpack.c.l.b16 %v219
    %v259 = vunpack.c.l.b16 %v220
    %v260 = vunpack.c.l.b16 %v221
    %v261 = vunpack.c.l.b16 %v222
    %v262 = vunpack.c.l.b16 %v223
    %v263 = vunpack.c.l.b16 %v224
    %v264 = vpack.c.b16 %v249, %v248
    %v265 = vpack.c.b16 %v251, %v250
    %v266 = vpack.c.b16 %v253, %v252
    %v267 = vpack.c.b16 %v255, %v254
    %v268 = vpack.c.b16 %v257, %v256
    %v269 = vpack.c.b16 %v259, %v258
    %v270 = vpack.c.b16 %v261, %v260
    %v271 = vpack.c.b16 %v263, %v262
    %280 = vmatprep.subr.bf16.mxu0 0
    %281 = vmatpush1.bf16.msra.mxu0 %v271
    %282 = vmatprep.subr.bf16.mxu0 0
    %283 = vmatpush1.bf16.msra.mxu0 %v270
    %284 = vmatprep.subr.bf16.mxu0 0
    %285 = vmatpush1.bf16.msra.mxu0 %v269
    %286 = vmatprep.subr.bf16.mxu0 0
    %287 = vmatpush1.bf16.msra.mxu0 %v268
    %288 = vmatprep.subr.bf16.mxu0 0
    %289 = vmatpush1.bf16.msra.mxu0 %v267
    %290 = vmatprep.subr.bf16.mxu0 0
    %291 = vmatpush1.bf16.msra.mxu0 %v266
    %292 = vmatprep.subr.bf16.mxu0 0
    %293 = vmatpush1.bf16.msra.mxu0 %v265
    %294 = vmatprep.subr.bf16.mxu0 0
    %295 = vmatpush1.bf16.msra.mxu0 %v264
    %296 = vmatprep.subr.bf16.mxu0 0
    %297 = vmatpush2.bf16.msra.mxu0 0
    %298 = vmatprep.subr.bf16.mxu0 0
    %299 = vmatpush2.bf16.msra.mxu0 0
    %300 = vmatprep.subr.bf16.mxu0 0
    %301 = vmatpush2.bf16.msra.mxu0 0
    %302 = vmatprep.subr.bf16.mxu0 0
    %303 = vmatpush2.bf16.msra.mxu0 0
    %304 = vmatprep.subr.bf16.mxu0 0
    %305 = vmatpush2.bf16.msra.mxu0 0
    %306 = vmatprep.subr.bf16.mxu0 0
    %307 = vmatpush2.bf16.msra.mxu0 0
    %308 = vmatprep.subr.bf16.mxu0 0
    %309 = vmatpush2.bf16.msra.mxu0 0
    %310 = vmatprep.subr.bf16.mxu0 0
    %311 = vmatpush2.bf16.msra.mxu0 0
    %312 = vmatprep.mubr.bf16.mxu0 0
    %313 = vmatmul.mubr.bf16.gmra.mxu0 %v208
    %v314 = vpop.f32.mrf.mxu0
    %v315 = vadd.f32 %v230, %v314
    %v316 = vpop.f32.mrf.mxu0
    %v317 = vpop.f32.mrf.mxu0
    %v318 = vpop.f32.mrf.mxu0
    %319 = vdwg.mxu0
    %v320 = vmax.f32 %v315, 0.0
    %v321 = vpack.c.bf16 %v320, %v320
    %v322 = vld [vmem:[#allocation10] sm:$0xf]
    %v323 = vld [vmem:[#allocation10 + $0x4] sm:$0xf]
    %v324 = vld [vmem:[#allocation10 + $0x8] sm:$0xf]
    %v325 = vld [vmem:[#allocation10 + $0xc] sm:$0xf]
    %v326 = vld [vmem:[#allocation10 + $0x10] sm:$0xf]
    %v327 = vld [vmem:[#allocation10 + $0x14] sm:$0xf]
    %v328 = vld [vmem:[#allocation10 + $0x18] sm:$0xf]
    %v329 = vld [vmem:[#allocation10 + $0x1c] sm:$0xf]
    %v330 = vld [vmem:[#allocation10 + $0x20] sm:$0xf]
    %v331 = vld [vmem:[#allocation10 + $0x24] sm:$0xf]
    %v332 = vld [vmem:[#allocation10 + $0x28] sm:$0xf]
    %v333 = vld [vmem:[#allocation10 + $0x2c] sm:$0xf]
    %v334 = vld [vmem:[#allocation10 + $0x30] sm:$0xf]
    %v335 = vld [vmem:[#allocation10 + $0x34] sm:$0xf]
    %v336 = vld [vmem:[#allocation10 + $0x38] sm:$0xf]
    %v337 = vld [vmem:[#allocation10 + $0x3c] sm:$0xf]
    %v338 = vld [vmem:[%s7] sm:$0x1]
    %v340 = vlaneseq
    %v341 = vshrl.u32 %v340, 7
    %v342 = vsub.s32 0, %v341
    %v343 = vrot.slane %v338, %v342
    %v361 = vunpack.c.l.b16 %v322
    %v362 = vunpack.c.l.b16 %v323
    %v363 = vunpack.c.l.b16 %v324
    %v364 = vunpack.c.l.b16 %v325
    %v365 = vunpack.c.l.b16 %v326
    %v366 = vunpack.c.l.b16 %v327
    %v367 = vunpack.c.l.b16 %v328
    %v368 = vunpack.c.l.b16 %v329
    %v369 = vunpack.c.l.b16 %v330
    %v370 = vunpack.c.l.b16 %v331
    %v371 = vunpack.c.l.b16 %v332
    %v372 = vunpack.c.l.b16 %v333
    %v373 = vunpack.c.l.b16 %v334
    %v374 = vunpack.c.l.b16 %v335
    %v375 = vunpack.c.l.b16 %v336
    %v376 = vunpack.c.l.b16 %v337
    %v377 = vpack.c.b16 %v362, %v361
    %v378 = vpack.c.b16 %v364, %v363
    %v379 = vpack.c.b16 %v366, %v365
    %v380 = vpack.c.b16 %v368, %v367
    %v381 = vpack.c.b16 %v370, %v369
    %v382 = vpack.c.b16 %v372, %v371
    %v383 = vpack.c.b16 %v374, %v373
    %v384 = vpack.c.b16 %v376, %v375
    %393 = vmatprep.subr.bf16.mxu0 0
    %394 = vmatpush1.bf16.msra.mxu0 %v384
    %395 = vmatprep.subr.bf16.mxu0 0
    %396 = vmatpush1.bf16.msra.mxu0 %v383
    %397 = vmatprep.subr.bf16.mxu0 0
    %398 = vmatpush1.bf16.msra.mxu0 %v382
    %399 = vmatprep.subr.bf16.mxu0 0
    %400 = vmatpush1.bf16.msra.mxu0 %v381
    %401 = vmatprep.subr.bf16.mxu0 0
    %402 = vmatpush1.bf16.msra.mxu0 %v380
    %403 = vmatprep.subr.bf16.mxu0 0
    %404 = vmatpush1.bf16.msra.mxu0 %v379
    %405 = vmatprep.subr.bf16.mxu0 0
    %406 = vmatpush1.bf16.msra.mxu0 %v378
    %407 = vmatprep.subr.bf16.mxu0 0
    %408 = vmatpush1.bf16.msra.mxu0 %v377
    %409 = vmatprep.subr.bf16.mxu0 0
    %410 = vmatpush2.bf16.msra.mxu0 0
    %411 = vmatprep.subr.bf16.mxu0 0
    %412 = vmatpush2.bf16.msra.mxu0 0
    %413 = vmatprep.subr.bf16.mxu0 0
    %414 = vmatpush2.bf16.msra.mxu0 0
    %415 = vmatprep.subr.bf16.mxu0 0
    %416 = vmatpush2.bf16.msra.mxu0 0
    %417 = vmatprep.subr.bf16.mxu0 0
    %418 = vmatpush2.bf16.msra.mxu0 0
    %419 = vmatprep.subr.bf16.mxu0 0
    %420 = vmatpush2.bf16.msra.mxu0 0
    %421 = vmatprep.subr.bf16.mxu0 0
    %422 = vmatpush2.bf16.msra.mxu0 0
    %423 = vmatprep.subr.bf16.mxu0 0
    %424 = vmatpush2.bf16.msra.mxu0 0
    %425 = vmatprep.mubr.bf16.mxu0 0
    %426 = vmatmul.mubr.bf16.gmra.mxu0 %v321
    %v427 = vpop.f32.mrf.mxu0
    %v428 = vadd.f32 %v343, %v427
    %v429 = vpop.f32.mrf.mxu0
    %v430 = vpop.f32.mrf.mxu0
    %v431 = vpop.f32.mrf.mxu0
    %432 = vdwg.mxu0
    %v433 = vld [vmem:[#allocation5] sm:$0xf]
    %v434 = vunpack.c.l.bf16 %v433
    %v435 = vsub.f32 %v434, 1.0
    %v436 = vmul.f32 %v435, 1e+09
    %v437 = vadd.f32 %v428, %v436
    %438 = vmax.xlane.f32.xlu0 %v437
    %v439 = vpop.xlane.xlu0 %438
    %v440 = vsub.f32 %v437, %v439
    %v441 = vmul.f32 %v440, 1.442695
    %v442 = vpow.pop %v441
    %443 = vadd.xlane.f32.xlu0 %v442
    %v444 = vpop.xlane.xlu0 %443
    %v445 = vrcp.pop %v444
    %v446 = vmul.f32 %v442, %v445
    %447 = vst [vmem:[#allocation11] sm:$0xff] %v446
    // Predicated region
    $region54: #{tpu_custom_call.1} parent=1 // pred_check
      _
    $region55: #{tpu_custom_call.1} parent=1 // pred_check_branch
      %449 = sbr.rel (0) target = $region57
    $region56: #{tpu_custom_call.1} parent=1 // pred_region
      %s451 = ssub.s32 128, 128
      %452 = vsyncadd [#allocation4], %s451
      %s454 = sshll.u32 [#allocation11], 4
      %s455 = int_to_ptr.vmem [resolvable:$true] %s454
      %457 = dma.vmem_to_hbm [thread:$0]  %s455, 128, %s8, [#allocation4]
    $region57: #{tpu_custom_call.1} parent=1 // pred_fallthru
      _
    // Predicated region
    $region58: #{tpu_custom_call.1} parent=1 // pred_check
      _
    $region59: #{tpu_custom_call.1} parent=1 // pred_check_branch
      %459 = sbr.rel (0) target = $region61
    $region60: #{tpu_custom_call.1} parent=1 // pred_region
      %460 = dma.done [#allocation4], 128
    $region61: #{tpu_custom_call.1} parent=1 // pred_fallthru
      _
    %461 = vsyncpa [#allocation3], 1
    %462 = vsyncpa [#allocation6], 1
    %463 = vsyncpa [#allocation9], 1
    %464 = vsyncpa [#allocation4], 1

</llo_original>
